<compile_context>
chip_gen: v7x
topology: tpu7x:2x2x1
jax: 0.10.0
libtpu: 0.0.40
codegen_flags: <defaults>
</compile_context>

<pallas_src>
import jax
import jax.numpy as jnp
from jax.experimental import pallas as pl
from jax.experimental.pallas import tpu as pltpu

HIDDEN = 256  # module hard-codes hidden_size = 256


# ----------------------------- row-tiled linear -----------------------------
def _linear_kernel(x_ref, w_ref, b_ref, y_ref):
    y_ref[...] = (jnp.dot(x_ref[...], w_ref[...], preferred_element_type=jnp.float32)
                  + b_ref[...])


def linear(x, w, b, block_rows=256):
    """y = x @ w + b with row tiling and lane-dense (>=128) output columns."""
    N, Din = x.shape
    Dout = w.shape[1]
    dout_p = max(128, ((Dout + 127) // 128) * 128)
    if dout_p != Dout:
        w = jnp.pad(w, ((0, 0), (0, dout_p - Dout)))
        b = jnp.pad(b, ((0, 0), (0, dout_p - Dout)))
    bm = min(block_rows, ((N + 7) // 8) * 8)
    n_p = ((N + bm - 1) // bm) * bm
    if n_p != N:
        x = jnp.pad(x, ((0, n_p - N), (0, 0)))
    grid_spec = pltpu.PrefetchScalarGridSpec(
        num_scalar_prefetch=0,
        grid=(n_p // bm,),
        in_specs=[
            pl.BlockSpec((bm, Din), lambda i: (i, 0)),
            pl.BlockSpec((Din, dout_p), lambda i: (0, 0)),
            pl.BlockSpec((1, dout_p), lambda i: (0, 0)),
        ],
        out_specs=pl.BlockSpec((bm, dout_p), lambda i: (i, 0)),
    )
    y = pl.pallas_call(
        _linear_kernel,
        out_shape=jax.ShapeDtypeStruct((n_p, dout_p), jnp.float32),
        grid_spec=grid_spec,
        compiler_params=pltpu.CompilerParams(dimension_semantics=("parallel",)),
    )(x, w, b)
    return y[:N, :Dout]


# ------------------- fused bidirectional LSTM recurrence -------------------
def _bilstm_kernel(gxf_ref, gxb_ref, whhf_ref, whhb_ref,
                   yf_ref, yb_ref, hfN_ref, cfN_ref, hbN_ref, cbN_ref,
                   hf_sc, cf_sc, hb_sc, cb_sc):
    t = pl.program_id(0)
    nt = pl.num_programs(0)

    @pl.when(t == 0)
    def _():
        hf_sc[...] = jnp.zeros_like(hf_sc)
        cf_sc[...] = jnp.zeros_like(cf_sc)
        hb_sc[...] = jnp.zeros_like(hb_sc)
        cb_sc[...] = jnp.zeros_like(cb_sc)

    H = hf_sc.shape[1]

    def cell(gx, h, c, whh_ref):
        # gx already contains x @ W_ih + (b_ih + b_hh); torch gate order i,f,g,o
        g = gx + jnp.dot(h, whh_ref[...], preferred_element_type=jnp.float32)
        i = jax.nn.sigmoid(g[:, 0 * H:1 * H])
        f = jax.nn.sigmoid(g[:, 1 * H:2 * H])
        gg = jnp.tanh(g[:, 2 * H:3 * H])
        o = jax.nn.sigmoid(g[:, 3 * H:4 * H])
        cn = f * c + i * gg
        return o * jnp.tanh(cn), cn

    hf, cf = cell(gxf_ref[0], hf_sc[...], cf_sc[...], whhf_ref)
    hb, cb = cell(gxb_ref[0], hb_sc[...], cb_sc[...], whhb_ref)
    hf_sc[...] = hf
    cf_sc[...] = cf
    hb_sc[...] = hb
    cb_sc[...] = cb
    yf_ref[0] = hf
    yb_ref[0] = hb

    @pl.when(t == nt - 1)
    def _():
        hfN_ref[...] = hf
        cfN_ref[...] = cf
        hbN_ref[...] = hb
        cbN_ref[...] = cb


def _bilstm_recurrent(gxf, gxb, whhf, whhb):
    T, B, G = gxf.shape
    H = G // 4
    grid_spec = pltpu.PrefetchScalarGridSpec(
        num_scalar_prefetch=0,
        grid=(T,),
        in_specs=[
            pl.BlockSpec((1, B, G), lambda t: (t, 0, 0)),           # fwd gates_x
            pl.BlockSpec((1, B, G), lambda t: (T - 1 - t, 0, 0)),   # bwd gates_x (reversed walk)
            pl.BlockSpec((H, G), lambda t: (0, 0)),
            pl.BlockSpec((H, G), lambda t: (0, 0)),
        ],
        out_specs=[
            pl.BlockSpec((1, B, H), lambda t: (t, 0, 0)),           # y forward
            pl.BlockSpec((1, B, H), lambda t: (T - 1 - t, 0, 0)),   # y backward, stored in orig order
            pl.BlockSpec((B, H), lambda t: (0, 0)),
            pl.BlockSpec((B, H), lambda t: (0, 0)),
            pl.BlockSpec((B, H), lambda t: (0, 0)),
            pl.BlockSpec((B, H), lambda t: (0, 0)),
        ],
        scratch_shapes=[pltpu.VMEM((B, H), jnp.float32)] * 4,
    )
    return pl.pallas_call(
        _bilstm_kernel,
        out_shape=(jax.ShapeDtypeStruct((T, B, H), jnp.float32),
                   jax.ShapeDtypeStruct((T, B, H), jnp.float32),
                   jax.ShapeDtypeStruct((B, H), jnp.float32),
                   jax.ShapeDtypeStruct((B, H), jnp.float32),
                   jax.ShapeDtypeStruct((B, H), jnp.float32),
                   jax.ShapeDtypeStruct((B, H), jnp.float32)),
        grid_spec=grid_spec,
        compiler_params=pltpu.CompilerParams(dimension_semantics=("arbitrary",)),
    )(gxf, gxb, whhf, whhb)


def bilstm(x_btd, p_fwd, p_bwd):
    """nn.LSTM(bidirectional=True, batch_first=True, num_layers=1), zero init state."""
    B, T, Din = x_btd.shape
    H = p_fwd[1].shape[0]
    # hoisted input projection: one big (T*B, Din) @ (Din, 4H) matmul per direction
    x_flat = jnp.transpose(x_btd, (1, 0, 2)).reshape(T * B, Din)
    gxf = linear(x_flat, p_fwd[0], p_fwd[2]).reshape(T, B, 4 * H)
    gxb = linear(x_flat, p_bwd[0], p_bwd[2]).reshape(T, B, 4 * H)
    yf, yb, hf, cf, hb, cb = _bilstm_recurrent(gxf, gxb, p_fwd[1], p_bwd[1])
    y = jnp.transpose(jnp.concatenate([yf, yb], axis=-1), (1, 0, 2))   # (B, T, 2H)
    return y, (hf, cf, hb, cb)


# ---------------------- fused attention slot decoder ----------------------
def _decoder_kernel(enc_ref, enct_ref, h0f_ref, c0f_ref, h0b_ref, c0b_ref,
                    wae_ref, wah_ref, bat_ref,
                    wca_ref, wcb_ref, bcb_ref,
                    wihf_ref, whhf_ref, bf_ref,
                    wihb_ref, whhb_ref, bb_ref,
                    out_ref,
                    hf_sc, cf_sc, hb_sc, cb_sc, senc_sc):
    di = pl.program_id(0)

    @pl.when(di == 0)
    def _():
        hf_sc[...] = h0f_ref[...]
        cf_sc[...] = c0f_ref[...]
        hb_sc[...] = h0b_ref[...]
        cb_sc[...] = c0b_ref[...]
        # encoder-side part of attn(cat(enc, hidden)) is the same every step.
        senc_sc[...] = jnp.sum(enc_ref[...] * wae_ref[...], axis=-1, keepdims=True)

    enc = enc_ref[...]                                           # (Bd, T, 2H)
    Bd = enc.shape[0]
    H = hf_sc.shape[1]

    hf = hf_sc[...]
    cf = cf_sc[...]
    hb = hb_sc[...]
    cb = cb_sc[...]

    # s_dec = hidden[0].view(-1, 2H) @ W_hid.  The torch .view is a
    # direction-major flatten (mixes batch rows); reproduce it with a
    # selection matmul instead of an in-kernel reshape.
    hstack = jnp.concatenate([hf, hb], axis=0)                                # (2Bd, H)
    P = jnp.dot(hstack, wah_ref[...], preferred_element_type=jnp.float32)     # (2Bd, 2)
    jidx = jax.lax.broadcasted_iota(jnp.int32, (2 * Bd, 1), 0)
    psel = jnp.where(jidx % 2 == 1, P[:, 1:2], P[:, 0:1])                     # (2Bd, 1)
    row = jax.lax.broadcasted_iota(jnp.int32, (Bd, 2 * Bd), 0)
    col = jax.lax.broadcasted_iota(jnp.int32, (Bd, 2 * Bd), 1)
    sel = ((col == 2 * row) | (col == 2 * row + 1)).astype(jnp.float32)       # (Bd, 2Bd)
    s_dec = jnp.dot(sel, psel, preferred_element_type=jnp.float32)            # (Bd, 1)

    scores = senc_sc[...] + s_dec[:, None, :] + bat_ref[0, 0]                 # (Bd, T, 1)
    m = jnp.max(scores, axis=1, keepdims=True)
    ex = jnp.exp(scores - m)
    p = ex / jnp.sum(ex, axis=1, keepdims=True)                               # softmax over time
    attn_applied = jnp.sum(enc * p, axis=1)                                   # (Bd, 2H)

    # attn_combine(cat(enc[:, di, :], attn_applied)) without materializing the concat
    enc_di = enct_ref[0]                                                      # (Bd, 2H)
    xin = jnp.maximum(
        jnp.dot(enc_di, wca_ref[...], preferred_element_type=jnp.float32)
        + jnp.dot(attn_applied, wcb_ref[...], preferred_element_type=jnp.float32)
        + bcb_ref[...], 0.0)                                                  # (Bd, H)

    def cell(h, c, wih_ref, whh_ref, b_ref):
        g = (jnp.dot(xin, wih_ref[...], preferred_element_type=jnp.float32)
             + jnp.dot(h, whh_ref[...], preferred_element_type=jnp.float32)
             + b_ref[...])
        i = jax.nn.sigmoid(g[:, 0 * H:1 * H])
        f = jax.nn.sigmoid(g[:, 1 * H:2 * H])
        gg = jnp.tanh(g[:, 2 * H:3 * H])
        o = jax.nn.sigmoid(g[:, 3 * H:4 * H])
        cn = f * c + i * gg
        return o * jnp.tanh(cn), cn

    hf_n, cf_n = cell(hf, cf, wihf_ref, whhf_ref, bf_ref)
    hb_n, cb_n = cell(hb, cb, wihb_ref, whhb_ref, bb_ref)
    hf_sc[...] = hf_n
    cf_sc[...] = cf_n
    hb_sc[...] = hb_n
    cb_sc[...] = cb_n
    out_ref[0] = jnp.concatenate([hf_n, hb_n], axis=1)                        # (Bd, 2H)


def attn_decoder(enc, h0f, c0f, h0b, c0b, params):
    Bd, T, E = enc.shape
    H = h0f.shape[1]
    enc_t = jnp.transpose(enc, (1, 0, 2))                  # (T, Bd, 2H) for per-step slice
    wca = params['attn_combine'][0][:2 * H, :]             # multiplies enc[:, di, :]
    wcb = params['attn_combine'][0][2 * H:, :]             # multiplies attn_applied
    bcb = params['attn_combine'][1]
    args = (enc, enc_t, h0f, c0f, h0b, c0b,
            params['attn_w_enc'], params['attn_w_hid'], params['attn_b'],
            wca, wcb, bcb,
            params['tok_f'][0], params['tok_f'][1], params['tok_f'][2],
            params['tok_b'][0], params['tok_b'][1], params['tok_b'][2])
    const2 = lambda di: (0, 0)
    grid_spec = pltpu.PrefetchScalarGridSpec(
        num_scalar_prefetch=0,
        grid=(T,),
        in_specs=[
            pl.BlockSpec((Bd, T, E), lambda di: (0, 0, 0)),   # encoder slab, VMEM-resident
            pl.BlockSpec((1, Bd, E), lambda di: (di, 0, 0)),  # enc[:, di, :]
            pl.BlockSpec((Bd, H), const2),                    # h0 fwd
            pl.BlockSpec((Bd, H), const2),                    # c0 fwd
            pl.BlockSpec((Bd, H), const2),                    # h0 bwd
            pl.BlockSpec((Bd, H), const2),                    # c0 bwd
            pl.BlockSpec((1, 1, E), lambda di: (0, 0, 0)),    # attn W (encoder half)
            pl.BlockSpec((H, 2), const2),                     # attn W (hidden half), (H, 2)
            pl.BlockSpec((1, 1), const2),                     # attn bias
            pl.BlockSpec((E, H), const2),                     # attn_combine W (enc half)
            pl.BlockSpec((E, H), const2),                     # attn_combine W (attn half)
            pl.BlockSpec((1, H), const2),                     # attn_combine bias
            pl.BlockSpec((H, 4 * H), const2),                 # rnn_token fwd W_ih
            pl.BlockSpec((H, 4 * H), const2),                 # rnn_token fwd W_hh
            pl.BlockSpec((1, 4 * H), const2),                 # rnn_token fwd bias
            pl.BlockSpec((H, 4 * H), const2),                 # rnn_token bwd W_ih
            pl.BlockSpec((H, 4 * H), const2),                 # rnn_token bwd W_hh
            pl.BlockSpec((1, 4 * H), const2),                 # rnn_token bwd bias
        ],
        out_specs=pl.BlockSpec((1, Bd, E), lambda di: (di, 0, 0)),
        scratch_shapes=[pltpu.VMEM((Bd, H), jnp.float32)] * 4
                       + [pltpu.VMEM((Bd, T, 1), jnp.float32)],
    )
    out_t = pl.pallas_call(
        _decoder_kernel,
        out_shape=jax.ShapeDtypeStruct((T, Bd, E), jnp.float32),
        grid_spec=grid_spec,
        compiler_params=pltpu.CompilerParams(dimension_semantics=("arbitrary",)),
    )(*args)
    return jnp.transpose(out_t, (1, 0, 2))                   # (Bd, T, 2H)


# --------------------------------- parameters ---------------------------------
def _init_linear(key, din, dout, scale=0.05):
    kw, kb = jax.random.split(key)
    return (scale * jax.random.normal(kw, (din, dout), jnp.float32),
            scale * jax.random.normal(kb, (1, dout), jnp.float32))


def _init_lstm_dir(key, din, h, scale=0.05):
    k1, k2, k3 = jax.random.split(key, 3)
    return (scale * jax.random.normal(k1, (din, 4 * h), jnp.float32),
            scale * jax.random.normal(k2, (h, 4 * h), jnp.float32),
            scale * jax.random.normal(k3, (1, 4 * h), jnp.float32))  # b_ih + b_hh folded


def init_params(key, vocab, num_labels, num_slot_labels):
    keys = jax.random.split(key, 13)
    H = HIDDEN
    attn_w, attn_b = _init_linear(keys[7], 4 * H, 1)   # nn.Linear(1024, 1), stored as (1024, 1)
    return {
        'embedding': 0.05 * jax.random.normal(keys[0], (vocab, H), jnp.float32),
        'utt_f': _init_lstm_dir(keys[1], H, H),
        'utt_b': _init_lstm_dir(keys[2], H, H),
        'conv_f': _init_lstm_dir(keys[3], 2 * H, H),
        'conv_b': _init_lstm_dir(keys[4], 2 * H, H),
        'dense1': _init_linear(keys[5], 2 * H, H),
        'dense2': _init_linear(keys[6], H, num_labels),
        'attn_w_enc': attn_w[:2 * H, 0].reshape(1, 1, 2 * H),
        # hidden-half of attn weight reorganized as (H, 2): col0 -> dech[:, :H], col1 -> dech[:, H:]
        'attn_w_hid': attn_w[2 * H:, 0].reshape(2, H).T,
        'attn_b': attn_b.reshape(1, 1),
        'attn_combine': _init_linear(keys[8], 4 * H, H),
        'tok_f': _init_lstm_dir(keys[9], H, H),
        'tok_b': _init_lstm_dir(keys[10], H, H),
        'classifier_slot': _init_linear(keys[11], 2 * H, num_slot_labels),
    }


# ---------------------------------- forward ----------------------------------
def eca_forward(params, result_ids, result_token_masks, result_masks, lengths,
                result_slot_labels, labels, y_caps, y_masks):
    b, d, t = result_ids.shape
    H = HIDDEN
    ids_flat = result_ids.reshape(-1, t)                                   # (b*d, t)
    X = jnp.take(params['embedding'], ids_flat, axis=0)                    # glue: embedding gather

    # utterance encoder (BiLSTM over tokens)
    rnn_out, (hf, cf, hb, cb) = bilstm(X, params['utt_f'], params['utt_b'])  # (b*d, t, 512)

    pooled = rnn_out[:, -1, :].reshape(b, d, 2 * H)
    conv_out, _ = bilstm(pooled, params['conv_f'], params['conv_b'])         # (b, d, 512)

    out2 = linear(conv_out.reshape(b * d, 2 * H), *params['dense1'])
    logits = linear(out2, *params['dense2']).reshape(b, d, -1)

    # ragged un-padding (glue; lengths are concrete host values)
    logits_np = jnp.concatenate([logits[i, :int(lengths[i]), :] for i in range(b)], axis=0)
    labels_np = jnp.concatenate([labels[i, :int(lengths[i]), :] for i in range(b)], axis=0)

    # attention slot decoder over token positions (single fused pallas_call)
    slot_outputs = attn_decoder(rnn_out, hf, cf, hb, cb, params)             # (b*d, t, 512)
    # TODO(synk): nn.Dropout(0.1) is stochastic; applied here as eval-mode identity.
    slot_logits = linear(slot_outputs.reshape(-1, 2 * H), *params['classifier_slot'])
    return logits_np, labels_np, slot_logits


if __name__ == "__main__":
    key = jax.random.PRNGKey(0)
    b, d, t = 2, 2, 6
    vocab = 1000  # TODO(synk): BertTokenizer vocab not loadable here; synthetic vocab size instead.
    num_labels, num_slot_labels = 2, 10

    pkey, ikey, lkey = jax.random.split(key, 3)
    params = init_params(pkey, vocab, num_labels, num_slot_labels)

    result_ids = jax.random.randint(ikey, (b, d, t), 0, vocab)
    labels = jax.random.normal(lkey, (b, d, num_labels), jnp.float32)
    lengths = [2, 1]

    logits, labels_out, slot_logits = eca_forward(
        params, result_ids, None, None, lengths, None, labels, None, None)
    jax.block_until_ready((logits, labels_out, slot_logits))
    assert logits.shape == (sum(lengths), num_labels)
    assert labels_out.shape == (sum(lengths), num_labels)
    assert slot_logits.shape == (b * d * t, num_slot_labels)
    print("KERNEL_OK")
</pallas_src>

<mosaic_0001>
module attributes {stable_mosaic.version = 11 : i64} {
  func.func @_linear_kernel(%arg0: i32, %arg1: memref<24x256xf32, #tpu.memory_space<vmem>>, %arg2: memref<256x1024xf32, #tpu.memory_space<vmem>>, %arg3: memref<1x1024xf32, #tpu.memory_space<vmem>>, %arg4: memref<24x1024xf32, #tpu.memory_space<vmem>>) attributes {dimension_semantics = [#tpu.dimension_semantics<parallel>], iteration_bounds = array<i64: 1>, scalar_prefetch = 0 : i64, scratch_operands = 0 : i64, tpu.core_type = #tpu.core_type<tc>, window_params = [{transform_indices = @transform_0, window_bounds = array<i64: 24, 256>}, {pipeline_mode = #tpu.pipeline_mode<synchronous>, transform_indices = @transform_1, window_bounds = array<i64: 256, 1024>}, {pipeline_mode = #tpu.pipeline_mode<synchronous>, transform_indices = @transform_2, window_bounds = array<i64: 1, 1024>}, {transform_indices = @transform_3, window_bounds = array<i64: 24, 1024>}]} {
    %c0 = arith.constant 0 : index
    %c0_0 = arith.constant 0 : index
    %0 = vector.load %arg1[%c0, %c0_0] : memref<24x256xf32, #tpu.memory_space<vmem>>, vector<24x256xf32>
    %c0_1 = arith.constant 0 : index
    %c0_2 = arith.constant 0 : index
    %1 = vector.load %arg2[%c0_1, %c0_2] : memref<256x1024xf32, #tpu.memory_space<vmem>>, vector<256x1024xf32>
    %cst = arith.constant dense<0.000000e+00> : vector<24x1024xf32>
    %2 = tpu.matmul %0, %1, %cst {dimension_numbers = #tpu.dot_dimension_numbers<[1], [0], [0], [1], [0, 0, 1, 1], [], []>} : vector<24x256xf32>, vector<256x1024xf32>, vector<24x1024xf32> -> vector<24x1024xf32>
    %c0_3 = arith.constant 0 : index
    %c0_4 = arith.constant 0 : index
    %3 = vector.load %arg3[%c0_3, %c0_4] : memref<1x1024xf32, #tpu.memory_space<vmem>>, vector<1x1024xf32>
    %4 = vector.broadcast %3 : vector<1x1024xf32> to vector<24x1024xf32>
    %5 = arith.addf %2, %4 : vector<24x1024xf32>
    %c0_5 = arith.constant 0 : index
    %c0_6 = arith.constant 0 : index
    %6 = vector.load %arg4[%c0_5, %c0_6] : memref<24x1024xf32, #tpu.memory_space<vmem>>, vector<24x1024xf32>
    tpu.vector_store %arg4[%c0_5, %c0_6], %5 {strides = array<i32>} : memref<24x1024xf32, #tpu.memory_space<vmem>>, vector<24x1024xf32>,
    return
  }
  func.func @transform_0(%arg0: i32) -> (i32, i32) {
    %c0_i32 = arith.constant 0 : i32
    %c0_i32_0 = arith.constant 0 : i32
    return %arg0, %c0_i32 : i32, i32
  }
  func.func @transform_1(%arg0: i32) -> (i32, i32) {
    %c0_i32 = arith.constant 0 : i32
    %c0_i32_0 = arith.constant 0 : i32
    %c0_i32_1 = arith.constant 0 : i32
    return %c0_i32, %c0_i32_0 : i32, i32
  }
  func.func @transform_2(%arg0: i32) -> (i32, i32) {
    %c0_i32 = arith.constant 0 : i32
    %c0_i32_0 = arith.constant 0 : i32
    %c0_i32_1 = arith.constant 0 : i32
    return %c0_i32, %c0_i32_0 : i32, i32
  }
  func.func @transform_3(%arg0: i32) -> (i32, i32) {
    %c0_i32 = arith.constant 0 : i32
    %c0_i32_0 = arith.constant 0 : i32
    return %arg0, %c0_i32 : i32, i32
  }
}

</mosaic_0001>

<llo_original>
// kernel: tpu_custom_call.1
$region0: #{tpu_custom_call.1}
  #allocation0 [shape = 'u32[]', space=smem, size = 0x4, offset = 0x4, fixed_abs, tag = 'smem constant byte address 0x4 - core index']
  #allocation1 [shape = 'u32[144,128]{1,0:T(1,128)}', space=vmem, size = 0x12000, scoped, tag = 'internal scratch']
  %s0 = inlined_call_operand.hbm [shape: f32[24,256], index: 0, kind: input, shape index: {}]
  %s1 = inlined_call_operand.hbm [shape: f32[256,1024], index: 1, kind: input, shape index: {}]
  %s2 = inlined_call_operand.hbm [shape: f32[1,1024], index: 2, kind: input, shape index: {}]
  %s3 = inlined_call_operand.hbm [shape: f32[24,1024], index: 3, kind: output, shape index: {}]
  %s4 = sld [smem:[#allocation0]]
  $region34: #{tpu_custom_call.1} parent=0
    _
  %s6 = ssub.s32 1, %s4
  %s7 = scalar_select 0, %s6, %s4
  $region1: #{tpu_custom_call.1} parent=0
    #allocation2 [shape = 'u8[24576]{0}', space=vmem, size = 0x6000, scoped, tag = 'input window, operand 0, single buffered']
    #allocation3 [shape = 's32[1]{0}', space=sflag, size = 0x4, scoped, tag = 'scoped memory for tpu_custom_call.1']
    #allocation4 [shape = 's32[1]{0}', space=sflag, size = 0x4, scoped, tag = 'scoped memory for tpu_custom_call.1']
    #allocation5 [shape = 'u8[1048576]{0}', space=vmem, size = 0x100000, scoped, tag = 'input window, operand 1, single buffered']
    #allocation6 [shape = 's32[1]{0}', space=sflag, size = 0x4, scoped, tag = 'scoped memory for tpu_custom_call.1']
    #allocation7 [shape = 'u8[4096]{0}', space=vmem, size = 0x1000, scoped, tag = 'input window, operand 2, single buffered']
    #allocation8 [shape = 'u8[98304]{0}', space=vmem, size = 0x18000, scoped, tag = 'output window, operand 0, single buffered']
    %8 = vsyncpa [#allocation3], 0
    %9 = vsyncpa [#allocation6], 0
    %10 = vsyncpa [#allocation4], 0
    // Predicated region
    $region2: #{tpu_custom_call.1} parent=1 // pred_check
      _
    $region3: #{tpu_custom_call.1} parent=1 // pred_check_branch
      %12 = sbr.rel (0) target = $region5
    $region4: #{tpu_custom_call.1} parent=1 // pred_region
      %s14 = ssub.s32 768, 768
      %15 = vsyncadd [#allocation3], %s14
      %s16 = sshll.u32 [#allocation2], 4
      %s17 = int_to_ptr.vmem [resolvable:$true] %s16
      %22 = dma.hbm_to_vmem [thread:$0]  %s0, 768, %s17, [#allocation3], 256, 256, 16
    $region5: #{tpu_custom_call.1} parent=1 // pred_fallthru
      _
    // Predicated region
    $region6: #{tpu_custom_call.1} parent=1 // pred_check
      _
    $region7: #{tpu_custom_call.1} parent=1 // pred_check_branch
      %24 = sbr.rel (0) target = $region9
    $region8: #{tpu_custom_call.1} parent=1 // pred_region
      %s26 = ssub.s32 32768, 32768
      %27 = vsyncadd [#allocation6], %s26
      %s28 = sshll.u32 [#allocation5], 4
      %s29 = int_to_ptr.vmem [resolvable:$true] %s28
      %34 = dma.hbm_to_vmem [thread:$0]  %s1, 32768, %s29, [#allocation6], 1024, 1024, 64
    $region9: #{tpu_custom_call.1} parent=1 // pred_fallthru
      _
    // Predicated region
    $region10: #{tpu_custom_call.1} parent=1 // pred_check
      _
    $region11: #{tpu_custom_call.1} parent=1 // pred_check_branch
      %36 = sbr.rel (0) target = $region13
    $region12: #{tpu_custom_call.1} parent=1 // pred_region
      %s38 = ssub.s32 128, 128
      %39 = vsyncadd [#allocation6], %s38
      %s41 = sshll.u32 [#allocation7], 4
      %s42 = int_to_ptr.vmem [resolvable:$true] %s41
      %44 = dma.hbm_to_vmem [thread:$0]  %s2, 128, %s42, [#allocation6]
    $region13: #{tpu_custom_call.1} parent=1 // pred_fallthru
      _
    // Predicated region
    $region14: #{tpu_custom_call.1} parent=1 // pred_check
      _
    $region15: #{tpu_custom_call.1} parent=1 // pred_check_branch
      %46 = sbr.rel (0) target = $region17
    $region16: #{tpu_custom_call.1} parent=1 // pred_region
      %47 = dma.done [#allocation3], 768
    $region17: #{tpu_custom_call.1} parent=1 // pred_fallthru
      _
    // Predicated region
    $region18: #{tpu_custom_call.1} parent=1 // pred_check
      _
    $region19: #{tpu_custom_call.1} parent=1 // pred_check_branch
      %49 = sbr.rel (0) target = $region21
    $region20: #{tpu_custom_call.1} parent=1 // pred_region
      %50 = dma.done [#allocation6], 32768
    $region21: #{tpu_custom_call.1} parent=1 // pred_fallthru
      _
    // Predicated region
    $region22: #{tpu_custom_call.1} parent=1 // pred_check
      _
    $region23: #{tpu_custom_call.1} parent=1 // pred_check_branch
      %52 = sbr.rel (0) target = $region25
    $region24: #{tpu_custom_call.1} parent=1 // pred_region
      %53 = dma.done [#allocation6], 128
    $region25: #{tpu_custom_call.1} parent=1 // pred_fallthru
      _
    %v54 = vld [vmem:[#allocation2] sm:$0xff]
    %v55 = vld [vmem:[#allocation2 + $0x8] sm:$0xff]
    %v56 = vld [vmem:[#allocation2 + $0x10] sm:$0xff]
    %v57 = vld [vmem:[#allocation2 + $0x18] sm:$0xff]
    %v58 = vld [vmem:[#allocation2 + $0x20] sm:$0xff]
    %v59 = vld [vmem:[#allocation2 + $0x28] sm:$0xff]
    %v60 = vld [vmem:[#allocation5] sm:$0xff]
    %v61 = vld [vmem:[#allocation5 + $0x8] sm:$0xff]
    %v62 = vld [vmem:[#allocation5 + $0x10] sm:$0xff]
    %v63 = vld [vmem:[#allocation5 + $0x18] sm:$0xff]
    %v64 = vld [vmem:[#allocation5 + $0x20] sm:$0xff]
    %v65 = vld [vmem:[#allocation5 + $0x28] sm:$0xff]
    %v66 = vld [vmem:[#allocation5 + $0x30] sm:$0xff]
    %v67 = vld [vmem:[#allocation5 + $0x38] sm:$0xff]
    %v68 = vld [vmem:[#allocation5 + $0x40] sm:$0xff]
    %v69 = vld [vmem:[#allocation5 + $0x48] sm:$0xff]
    %v70 = vld [vmem:[#allocation5 + $0x50] sm:$0xff]
    %v71 = vld [vmem:[#allocation5 + $0x58] sm:$0xff]
    %v72 = vld [vmem:[#allocation5 + $0x60] sm:$0xff]
    %v73 = vld [vmem:[#allocation5 + $0x68] sm:$0xff]
    %v74 = vld [vmem:[#allocation5 + $0x70] sm:$0xff]
    %v75 = vld [vmem:[#allocation5 + $0x78] sm:$0xff]
    %v76 = vld [vmem:[#allocation5 + $0x80] sm:$0xff]
    %v77 = vld [vmem:[#allocation5 + $0x88] sm:$0xff]
    %v78 = vld [vmem:[#allocation5 + $0x90] sm:$0xff]
    %v79 = vld [vmem:[#allocation5 + $0x98] sm:$0xff]
    %v80 = vld [vmem:[#allocation5 + $0xa0] sm:$0xff]
    %v81 = vld [vmem:[#allocation5 + $0xa8] sm:$0xff]
    %v82 = vld [vmem:[#allocation5 + $0xb0] sm:$0xff]
    %v83 = vld [vmem:[#allocation5 + $0xb8] sm:$0xff]
    %v84 = vld [vmem:[#allocation5 + $0xc0] sm:$0xff]
    %v85 = vld [vmem:[#allocation5 + $0xc8] sm:$0xff]
    %v86 = vld [vmem:[#allocation5 + $0xd0] sm:$0xff]
    %v87 = vld [vmem:[#allocation5 + $0xd8] sm:$0xff]
    %v88 = vld [vmem:[#allocation5 + $0xe0] sm:$0xff]
    %v89 = vld [vmem:[#allocation5 + $0xe8] sm:$0xff]
    %v90 = vld [vmem:[#allocation5 + $0xf0] sm:$0xff]
    %v91 = vld [vmem:[#allocation5 + $0xf8] sm:$0xff]
    %v92 = vld [vmem:[#allocation5 + $0x100] sm:$0xff]
    %v93 = vld [vmem:[#allocation5 + $0x108] sm:$0xff]
    %v94 = vld [vmem:[#allocation5 + $0x110] sm:$0xff]
    %v95 = vld [vmem:[#allocation5 + $0x118] sm:$0xff]
    %v96 = vld [vmem:[#allocation5 + $0x120] sm:$0xff]
    %v97 = vld [vmem:[#allocation5 + $0x128] sm:$0xff]
    %v98 = vld [vmem:[#allocation5 + $0x130] sm:$0xff]
    %v99 = vld [vmem:[#allocation5 + $0x138] sm:$0xff]
    %v100 = vld [vmem:[#allocation5 + $0x140] sm:$0xff]
    %v101 = vld [vmem:[#allocation5 + $0x148] sm:$0xff]
    %v102 = vld [vmem:[#allocation5 + $0x150] sm:$0xff]
    %v103 = vld [vmem:[#allocation5 + $0x158] sm:$0xff]
    %v104 = vld [vmem:[#allocation5 + $0x160] sm:$0xff]
    %v105 = vld [vmem:[#allocation5 + $0x168] sm:$0xff]
    %v106 = vld [vmem:[#allocation5 + $0x170] sm:$0xff]
    %v107 = vld [vmem:[#allocation5 + $0x178] sm:$0xff]
    %v108 = vld [vmem:[#allocation5 + $0x180] sm:$0xff]
    %v109 = vld [vmem:[#allocation5 + $0x188] sm:$0xff]
    %v110 = vld [vmem:[#allocation5 + $0x190] sm:$0xff]
    %v111 = vld [vmem:[#allocation5 + $0x198] sm:$0xff]
    %v112 = vld [vmem:[#allocation5 + $0x1a0] sm:$0xff]
    %v113 = vld [vmem:[#allocation5 + $0x1a8] sm:$0xff]
    %v114 = vld [vmem:[#allocation5 + $0x1b0] sm:$0xff]
    %v115 = vld [vmem:[#allocation5 + $0x1b8] sm:$0xff]
    %v116 = vld [vmem:[#allocation5 + $0x1c0] sm:$0xff]
    %v117 = vld [vmem:[#allocation5 + $0x1c8] sm:$0xff]
    %v118 = vld [vmem:[#allocation5 + $0x1d0] sm:$0xff]
    %v119 = vld [vmem:[#allocation5 + $0x1d8] sm:$0xff]
    %v120 = vld [vmem:[#allocation5 + $0x1e0] sm:$0xff]
    %v121 = vld [vmem:[#allocation5 + $0x1e8] sm:$0xff]
    %v122 = vld [vmem:[#allocation5 + $0x1f0] sm:$0xff]
    %v123 = vld [vmem:[#allocation5 + $0x1f8] sm:$0xff]
    %v124 = vld [vmem:[#allocation5 + $0x200] sm:$0xff]
    %v125 = vld [vmem:[#allocation5 + $0x208] sm:$0xff]
    %v126 = vld [vmem:[#allocation5 + $0x210] sm:$0xff]
    %v127 = vld [vmem:[#allocation5 + $0x218] sm:$0xff]
    %v128 = vld [vmem:[#allocation5 + $0x220] sm:$0xff]
    %v129 = vld [vmem:[#allocation5 + $0x228] sm:$0xff]
    %v130 = vld [vmem:[#allocation5 + $0x230] sm:$0xff]
    %v131 = vld [vmem:[#allocation5 + $0x238] sm:$0xff]
    %v132 = vld [vmem:[#allocation5 + $0x240] sm:$0xff]
    %v133 = vld [vmem:[#allocation5 + $0x248] sm:$0xff]
    %v134 = vld [vmem:[#allocation5 + $0x250] sm:$0xff]
    %v135 = vld [vmem:[#allocation5 + $0x258] sm:$0xff]
    %v136 = vld [vmem:[#allocation5 + $0x260] sm:$0xff]
    %v137 = vld [vmem:[#allocation5 + $0x268] sm:$0xff]
    %v138 = vld [vmem:[#allocation5 + $0x270] sm:$0xff]
    %v139 = vld [vmem:[#allocation5 + $0x278] sm:$0xff]
    %v140 = vld [vmem:[#allocation5 + $0x280] sm:$0xff]
    %v141 = vld [vmem:[#allocation5 + $0x288] sm:$0xff]
    %v142 = vld [vmem:[#allocation5 + $0x290] sm:$0xff]
    %v143 = vld [vmem:[#allocation5 + $0x298] sm:$0xff]
    %v144 = vld [vmem:[#allocation5 + $0x2a0] sm:$0xff]
    %v145 = vld [vmem:[#allocation5 + $0x2a8] sm:$0xff]
    %v146 = vld [vmem:[#allocation5 + $0x2b0] sm:$0xff]
    %v147 = vld [vmem:[#allocation5 + $0x2b8] sm:$0xff]
    %v148 = vld [vmem:[#allocation5 + $0x2c0] sm:$0xff]
    %v149 = vld [vmem:[#allocation5 + $0x2c8] sm:$0xff]
    %v150 = vld [vmem:[#allocation5 + $0x2d0] sm:$0xff]
    %v151 = vld [vmem:[#allocation5 + $0x2d8] sm:$0xff]
    %v152 = vld [vmem:[#allocation5 + $0x2e0] sm:$0xff]
    %v153 = vld [vmem:[#allocation5 + $0x2e8] sm:$0xff]
    %v154 = vld [vmem:[#allocation5 + $0x2f0] sm:$0xff]
    %v155 = vld [vmem:[#allocation5 + $0x2f8] sm:$0xff]
    %v156 = vld [vmem:[#allocation5 + $0x300] sm:$0xff]
    %v157 = vld [vmem:[#allocation5 + $0x308] sm:$0xff]
    %v158 = vld [vmem:[#allocation5 + $0x310] sm:$0xff]
    %v159 = vld [vmem:[#allocation5 + $0x318] sm:$0xff]
    %v160 = vld [vmem:[#allocation5 + $0x320] sm:$0xff]
    %v161 = vld [vmem:[#allocation5 + $0x328] sm:$0xff]
    %v162 = vld [vmem:[#allocation5 + $0x330] sm:$0xff]
    %v163 = vld [vmem:[#allocation5 + $0x338] sm:$0xff]
    %v164 = vld [vmem:[#allocation5 + $0x340] sm:$0xff]
    %v165 = vld [vmem:[#allocation5 + $0x348] sm:$0xff]
    %v166 = vld [vmem:[#allocation5 + $0x350] sm:$0xff]
    %v167 = vld [vmem:[#allocation5 + $0x358] sm:$0xff]
    %v168 = vld [vmem:[#allocation5 + $0x360] sm:$0xff]
    %v169 = vld [vmem:[#allocation5 + $0x368] sm:$0xff]
    %v170 = vld [vmem:[#allocation5 + $0x370] sm:$0xff]
    %v171 = vld [vmem:[#allocation5 + $0x378] sm:$0xff]
    %v172 = vld [vmem:[#allocation5 + $0x380] sm:$0xff]
    %v173 = vld [vmem:[#allocation5 + $0x388] sm:$0xff]
    %v174 = vld [vmem:[#allocation5 + $0x390] sm:$0xff]
    %v175 = vld [vmem:[#allocation5 + $0x398] sm:$0xff]
    %v176 = vld [vmem:[#allocation5 + $0x3a0] sm:$0xff]
    %v177 = vld [vmem:[#allocation5 + $0x3a8] sm:$0xff]
    %v178 = vld [vmem:[#allocation5 + $0x3b0] sm:$0xff]
    %v179 = vld [vmem:[#allocation5 + $0x3b8] sm:$0xff]
    %v180 = vld [vmem:[#allocation5 + $0x3c0] sm:$0xff]
    %v181 = vld [vmem:[#allocation5 + $0x3c8] sm:$0xff]
    %v182 = vld [vmem:[#allocation5 + $0x3d0] sm:$0xff]
    %v183 = vld [vmem:[#allocation5 + $0x3d8] sm:$0xff]
    %v184 = vld [vmem:[#allocation5 + $0x3e0] sm:$0xff]
    %v185 = vld [vmem:[#allocation5 + $0x3e8] sm:$0xff]
    %v186 = vld [vmem:[#allocation5 + $0x3f0] sm:$0xff]
    %v187 = vld [vmem:[#allocation5 + $0x3f8] sm:$0xff]
    %v188 = vld [vmem:[#allocation5 + $0x400] sm:$0xff]
    %v189 = vld [vmem:[#allocation5 + $0x408] sm:$0xff]
    %v190 = vld [vmem:[#allocation5 + $0x410] sm:$0xff]
    %v191 = vld [vmem:[#allocation5 + $0x418] sm:$0xff]
    %v192 = vld [vmem:[#allocation5 + $0x420] sm:$0xff]
    %v193 = vld [vmem:[#allocation5 + $0x428] sm:$0xff]
    %v194 = vld [vmem:[#allocation5 + $0x430] sm:$0xff]
    %v195 = vld [vmem:[#allocation5 + $0x438] sm:$0xff]
    %v196 = vld [vmem:[#allocation5 + $0x440] sm:$0xff]
    %v197 = vld [vmem:[#allocation5 + $0x448] sm:$0xff]
    %v198 = vld [vmem:[#allocation5 + $0x450] sm:$0xff]
    %v199 = vld [vmem:[#allocation5 + $0x458] sm:$0xff]
    %v200 = vld [vmem:[#allocation5 + $0x460] sm:$0xff]
    %v201 = vld [vmem:[#allocation5 + $0x468] sm:$0xff]
    %v202 = vld [vmem:[#allocation5 + $0x470] sm:$0xff]
    %v203 = vld [vmem:[#allocation5 + $0x478] sm:$0xff]
    %v204 = vld [vmem:[#allocation5 + $0x480] sm:$0xff]
    %v205 = vld [vmem:[#allocation5 + $0x488] sm:$0xff]
    %v206 = vld [vmem:[#allocation5 + $0x490] sm:$0xff]
    %v207 = vld [vmem:[#allocation5 + $0x498] sm:$0xff]
    %v208 = vld [vmem:[#allocation5 + $0x4a0] sm:$0xff]
    %v209 = vld [vmem:[#allocation5 + $0x4a8] sm:$0xff]
    %v210 = vld [vmem:[#allocation5 + $0x4b0] sm:$0xff]
    %v211 = vld [vmem:[#allocation5 + $0x4b8] sm:$0xff]
    %v212 = vld [vmem:[#allocation5 + $0x4c0] sm:$0xff]
    %v213 = vld [vmem:[#allocation5 + $0x4c8] sm:$0xff]
    %v214 = vld [vmem:[#allocation5 + $0x4d0] sm:$0xff]
    %v215 = vld [vmem:[#allocation5 + $0x4d8] sm:$0xff]
    %v216 = vld [vmem:[#allocation5 + $0x4e0] sm:$0xff]
    %v217 = vld [vmem:[#allocation5 + $0x4e8] sm:$0xff]
    %v218 = vld [vmem:[#allocation5 + $0x4f0] sm:$0xff]
    %v219 = vld [vmem:[#allocation5 + $0x4f8] sm:$0xff]
    %v220 = vld [vmem:[#allocation5 + $0x500] sm:$0xff]
    %v221 = vld [vmem:[#allocation5 + $0x508] sm:$0xff]
    %v222 = vld [vmem:[#allocation5 + $0x510] sm:$0xff]
    %v223 = vld [vmem:[#allocation5 + $0x518] sm:$0xff]
    %v224 = vld [vmem:[#allocation5 + $0x520] sm:$0xff]
    %v225 = vld [vmem:[#allocation5 + $0x528] sm:$0xff]
    %v226 = vld [vmem:[#allocation5 + $0x530] sm:$0xff]
    %v227 = vld [vmem:[#allocation5 + $0x538] sm:$0xff]
    %v228 = vld [vmem:[#allocation5 + $0x540] sm:$0xff]
    %v229 = vld [vmem:[#allocation5 + $0x548] sm:$0xff]
    %v230 = vld [vmem:[#allocation5 + $0x550] sm:$0xff]
    %v231 = vld [vmem:[#allocation5 + $0x558] sm:$0xff]
    %v232 = vld [vmem:[#allocation5 + $0x560] sm:$0xff]
    %v233 = vld [vmem:[#allocation5 + $0x568] sm:$0xff]
    %v234 = vld [vmem:[#allocation5 + $0x570] sm:$0xff]
    %v235 = vld [vmem:[#allocation5 + $0x578] sm:$0xff]
    %v236 = vld [vmem:[#allocation5 + $0x580] sm:$0xff]
    %v237 = vld [vmem:[#allocation5 + $0x588] sm:$0xff]
    %v238 = vld [vmem:[#allocation5 + $0x590] sm:$0xff]
    %v239 = vld [vmem:[#allocation5 + $0x598] sm:$0xff]
    %v240 = vld [vmem:[#allocation5 + $0x5a0] sm:$0xff]
    %v241 = vld [vmem:[#allocation5 + $0x5a8] sm:$0xff]
    %v242 = vld [vmem:[#allocation5 + $0x5b0] sm:$0xff]
    %v243 = vld [vmem:[#allocation5 + $0x5b8] sm:$0xff]
    %v244 = vld [vmem:[#allocation5 + $0x5c0] sm:$0xff]
    %v245 = vld [vmem:[#allocation5 + $0x5c8] sm:$0xff]
    %v246 = vld [vmem:[#allocation5 + $0x5d0] sm:$0xff]
    %v247 = vld [vmem:[#allocation5 + $0x5d8] sm:$0xff]
    %v248 = vld [vmem:[#allocation5 + $0x5e0] sm:$0xff]
    %v249 = vld [vmem:[#allocation5 + $0x5e8] sm:$0xff]
    %v250 = vld [vmem:[#allocation5 + $0x5f0] sm:$0xff]
    %v251 = vld [vmem:[#allocation5 + $0x5f8] sm:$0xff]
    %v252 = vld [vmem:[#allocation5 + $0x600] sm:$0xff]
    %v253 = vld [vmem:[#allocation5 + $0x608] sm:$0xff]
    %v254 = vld [vmem:[#allocation5 + $0x610] sm:$0xff]
    %v255 = vld [vmem:[#allocation5 + $0x618] sm:$0xff]
    %v256 = vld [vmem:[#allocation5 + $0x620] sm:$0xff]
    %v257 = vld [vmem:[#allocation5 + $0x628] sm:$0xff]
    %v258 = vld [vmem:[#allocation5 + $0x630] sm:$0xff]
    %v259 = vld [vmem:[#allocation5 + $0x638] sm:$0xff]
    %v260 = vld [vmem:[#allocation5 + $0x640] sm:$0xff]
    %v261 = vld [vmem:[#allocation5 + $0x648] sm:$0xff]
    %v262 = vld [vmem:[#allocation5 + $0x650] sm:$0xff]
    %v263 = vld [vmem:[#allocation5 + $0x658] sm:$0xff]
    %v264 = vld [vmem:[#allocation5 + $0x660] sm:$0xff]
    %v265 = vld [vmem:[#allocation5 + $0x668] sm:$0xff]
    %v266 = vld [vmem:[#allocation5 + $0x670] sm:$0xff]
    %v267 = vld [vmem:[#allocation5 + $0x678] sm:$0xff]
    %v268 = vld [vmem:[#allocation5 + $0x680] sm:$0xff]
    %v269 = vld [vmem:[#allocation5 + $0x688] sm:$0xff]
    %v270 = vld [vmem:[#allocation5 + $0x690] sm:$0xff]
    %v271 = vld [vmem:[#allocation5 + $0x698] sm:$0xff]
    %v272 = vld [vmem:[#allocation5 + $0x6a0] sm:$0xff]
    %v273 = vld [vmem:[#allocation5 + $0x6a8] sm:$0xff]
    %v274 = vld [vmem:[#allocation5 + $0x6b0] sm:$0xff]
    %v275 = vld [vmem:[#allocation5 + $0x6b8] sm:$0xff]
    %v276 = vld [vmem:[#allocation5 + $0x6c0] sm:$0xff]
    %v277 = vld [vmem:[#allocation5 + $0x6c8] sm:$0xff]
    %v278 = vld [vmem:[#allocation5 + $0x6d0] sm:$0xff]
    %v279 = vld [vmem:[#allocation5 + $0x6d8] sm:$0xff]
    %v280 = vld [vmem:[#allocation5 + $0x6e0] sm:$0xff]
    %v281 = vld [vmem:[#allocation5 + $0x6e8] sm:$0xff]
    %v282 = vld [vmem:[#allocation5 + $0x6f0] sm:$0xff]
    %v283 = vld [vmem:[#allocation5 + $0x6f8] sm:$0xff]
    %v284 = vld [vmem:[#allocation5 + $0x700] sm:$0xff]
    %v285 = vld [vmem:[#allocation5 + $0x708] sm:$0xff]
    %v286 = vld [vmem:[#allocation5 + $0x710] sm:$0xff]
    %v287 = vld [vmem:[#allocation5 + $0x718] sm:$0xff]
    %v288 = vld [vmem:[#allocation5 + $0x720] sm:$0xff]
    %v289 = vld [vmem:[#allocation5 + $0x728] sm:$0xff]
    %v290 = vld [vmem:[#allocation5 + $0x730] sm:$0xff]
    %v291 = vld [vmem:[#allocation5 + $0x738] sm:$0xff]
    %v292 = vld [vmem:[#allocation5 + $0x740] sm:$0xff]
    %v293 = vld [vmem:[#allocation5 + $0x748] sm:$0xff]
    %v294 = vld [vmem:[#allocation5 + $0x750] sm:$0xff]
    %v295 = vld [vmem:[#allocation5 + $0x758] sm:$0xff]
    %v296 = vld [vmem:[#allocation5 + $0x760] sm:$0xff]
    %v297 = vld [vmem:[#allocation5 + $0x768] sm:$0xff]
    %v298 = vld [vmem:[#allocation5 + $0x770] sm:$0xff]
    %v299 = vld [vmem:[#allocation5 + $0x778] sm:$0xff]
    %v300 = vld [vmem:[#allocation5 + $0x780] sm:$0xff]
    %v301 = vld [vmem:[#allocation5 + $0x788] sm:$0xff]
    %v302 = vld [vmem:[#allocation5 + $0x790] sm:$0xff]
    %v303 = vld [vmem:[#allocation5 + $0x798] sm:$0xff]
    %v304 = vld [vmem:[#allocation5 + $0x7a0] sm:$0xff]
    %v305 = vld [vmem:[#allocation5 + $0x7a8] sm:$0xff]
    %v306 = vld [vmem:[#allocation5 + $0x7b0] sm:$0xff]
    %v307 = vld [vmem:[#allocation5 + $0x7b8] sm:$0xff]
    %v308 = vld [vmem:[#allocation5 + $0x7c0] sm:$0xff]
    %v309 = vld [vmem:[#allocation5 + $0x7c8] sm:$0xff]
    %v310 = vld [vmem:[#allocation5 + $0x7d0] sm:$0xff]
    %v311 = vld [vmem:[#allocation5 + $0x7d8] sm:$0xff]
    %v312 = vld [vmem:[#allocation5 + $0x7e0] sm:$0xff]
    %v313 = vld [vmem:[#allocation5 + $0x7e8] sm:$0xff]
    %v314 = vld [vmem:[#allocation5 + $0x7f0] sm:$0xff]
    %v315 = vld [vmem:[#allocation5 + $0x7f8] sm:$0xff]
    %v316 = vld [vmem:[#allocation7] sm:$0xff]
    %v318 = vlaneseq
    %v319 = vshrl.u32 %v318, 7
    %v320 = vsub.s32 0, %v319
    %v321 = vrot.slane %v316, %v320
    %v322 = vlaneseq
    %v323 = vshrl.u32 %v322, 7
    %v324 = vsub.s32 1, %v323
    %v325 = vrot.slane %v316, %v324
    %v326 = vlaneseq
    %v327 = vshrl.u32 %v326, 7
    %v328 = vsub.s32 2, %v327
    %v329 = vrot.slane %v316, %v328
    %v330 = vlaneseq
    %v331 = vshrl.u32 %v330, 7
    %v332 = vsub.s32 3, %v331
    %v333 = vrot.slane %v316, %v332
    %v334 = vlaneseq
    %v335 = vshrl.u32 %v334, 7
    %v336 = vsub.s32 4, %v335
    %v337 = vrot.slane %v316, %v336
    %v338 = vlaneseq
    %v339 = vshrl.u32 %v338, 7
    %v340 = vsub.s32 5, %v339
    %v341 = vrot.slane %v316, %v340
    %v342 = vlaneseq
    %v343 = vshrl.u32 %v342, 7
    %v344 = vsub.s32 6, %v343
    %v345 = vrot.slane %v316, %v344
    %v346 = vlaneseq
    %v347 = vshrl.u32 %v346, 7
    %v348 = vsub.s32 7, %v347
    %v349 = vrot.slane %v316, %v348
    %358 = vmatprep.subr.mxu0 %v61
    %359 = vmatpush1.msra.mxu0 %v60
    %360 = vmatprep.subr.mxu0 %v69
    %361 = vmatpush1.msra.mxu0 %v68
    %362 = vmatprep.subr.mxu0 %v77
    %363 = vmatpush1.msra.mxu0 %v76
    %364 = vmatprep.subr.mxu0 %v85
    %365 = vmatpush1.msra.mxu0 %v84
    %366 = vmatprep.subr.mxu0 %v93
    %367 = vmatpush1.msra.mxu0 %v92
    %368 = vmatprep.subr.mxu0 %v101
    %369 = vmatpush1.msra.mxu0 %v100
    %370 = vmatprep.subr.mxu0 %v109
    %371 = vmatpush1.msra.mxu0 %v108
    %372 = vmatprep.subr.mxu0 %v117
    %373 = vmatpush1.msra.mxu0 %v116
    %374 = vmatprep.subr.mxu0 %v125
    %375 = vmatpush1.msra.mxu0 %v124
    %376 = vmatprep.subr.mxu0 %v133
    %377 = vmatpush1.msra.mxu0 %v132
    %378 = vmatprep.subr.mxu0 %v141
    %379 = vmatpush1.msra.mxu0 %v140
    %380 = vmatprep.subr.mxu0 %v149
    %381 = vmatpush1.msra.mxu0 %v148
    %382 = vmatprep.subr.mxu0 %v157
    %383 = vmatpush1.msra.mxu0 %v156
    %384 = vmatprep.subr.mxu0 %v165
    %385 = vmatpush1.msra.mxu0 %v164
    %386 = vmatprep.subr.mxu0 %v173
    %387 = vmatpush1.msra.mxu0 %v172
    %388 = vmatprep.subr.mxu0 %v181
    %389 = vmatpush1.msra.mxu0 %v180
    %390 = vmatprep.subr.mxu0 %v189
    %391 = vmatpush1.msra.mxu0 %v188
    %392 = vmatprep.subr.mxu0 %v197
    %393 = vmatpush1.msra.mxu0 %v196
    %394 = vmatprep.subr.mxu0 %v205
    %395 = vmatpush1.msra.mxu0 %v204
    %396 = vmatprep.subr.mxu0 %v213
    %397 = vmatpush1.msra.mxu0 %v212
    %398 = vmatprep.subr.mxu0 %v221
    %399 = vmatpush1.msra.mxu0 %v220
    %400 = vmatprep.subr.mxu0 %v229
    %401 = vmatpush1.msra.mxu0 %v228
    %402 = vmatprep.subr.mxu0 %v237
    %403 = vmatpush1.msra.mxu0 %v236
    %404 = vmatprep.subr.mxu0 %v245
    %405 = vmatpush1.msra.mxu0 %v244
    %406 = vmatprep.subr.mxu0 %v253
    %407 = vmatpush1.msra.mxu0 %v252
    %408 = vmatprep.subr.mxu0 %v261
    %409 = vmatpush1.msra.mxu0 %v260
    %410 = vmatprep.subr.mxu0 %v269
    %411 = vmatpush1.msra.mxu0 %v268
    %412 = vmatprep.subr.mxu0 %v277
    %413 = vmatpush1.msra.mxu0 %v276
    %414 = vmatprep.subr.mxu0 %v285
    %415 = vmatpush1.msra.mxu0 %v284
    %416 = vmatprep.subr.mxu0 %v293
    %417 = vmatpush1.msra.mxu0 %v292
    %418 = vmatprep.subr.mxu0 %v301
    %419 = vmatpush1.msra.mxu0 %v300
    %420 = vmatprep.subr.mxu0 %v309
    %421 = vmatpush1.msra.mxu0 %v308
    %422 = vmatprep.mubr.f32.mxu0 %v55
    %423 = vmatmul.mubr.f32.gmra.mrb[0].mxu0 %v54
    %v424 = vpop.f32.mrb[0].mxu0
    %v425 = vadd.f32 %v321, %v424
    %v426 = vpop.f32.mrb[0].mxu0
    %v427 = vadd.f32 %v325, %v426
    %428 = vmatprep.mubr.f32.mxu0 %v57
    %429 = vmatmul.mubr.f32.gmra.mrb[0].mxu0 %v56
    %v430 = vpop.f32.mrb[0].mxu0
    %v431 = vadd.f32 %v321, %v430
    %v432 = vpop.f32.mrb[0].mxu0
    %v433 = vadd.f32 %v325, %v432
    %434 = vmatprep.mubr.f32.mxu0 %v59
    %435 = vmatmul.mubr.f32.gmra.mrb[0].mxu0 %v58
    %v436 = vpop.f32.mrb[0].mxu0
    %v437 = vadd.f32 %v321, %v436
    %v438 = vpop.f32.mrb[0].mxu0
    %v439 = vadd.f32 %v325, %v438
    %440 = vdwg.mxu0
    %441 = vmatprep.subr.mxu0 %v63
    %442 = vmatpush1.msra.mxu0 %v62
    %443 = vmatprep.subr.mxu0 %v71
    %444 = vmatpush1.msra.mxu0 %v70
    %445 = vmatprep.subr.mxu0 %v79
    %446 = vmatpush1.msra.mxu0 %v78
    %447 = vmatprep.subr.mxu0 %v87
    %448 = vmatpush1.msra.mxu0 %v86
    %449 = vmatprep.subr.mxu0 %v95
    %450 = vmatpush1.msra.mxu0 %v94
    %451 = vmatprep.subr.mxu0 %v103
    %452 = vmatpush1.msra.mxu0 %v102
    %453 = vmatprep.subr.mxu0 %v111
    %454 = vmatpush1.msra.mxu0 %v110
    %455 = vmatprep.subr.mxu0 %v119
    %456 = vmatpush1.msra.mxu0 %v118
    %457 = vmatprep.subr.mxu0 %v127
    %458 = vmatpush1.msra.mxu0 %v126
    %459 = vmatprep.subr.mxu0 %v135
    %460 = vmatpush1.msra.mxu0 %v134
    %461 = vmatprep.subr.mxu0 %v143
    %462 = vmatpush1.msra.mxu0 %v142
    %463 = vmatprep.subr.mxu0 %v151
    %464 = vmatpush1.msra.mxu0 %v150
    %465 = vmatprep.subr.mxu0 %v159
    %466 = vmatpush1.msra.mxu0 %v158
    %467 = vmatprep.subr.mxu0 %v167
    %468 = vmatpush1.msra.mxu0 %v166
    %469 = vmatprep.subr.mxu0 %v175
    %470 = vmatpush1.msra.mxu0 %v174
    %471 = vmatprep.subr.mxu0 %v183
    %472 = vmatpush1.msra.mxu0 %v182
    %473 = vmatprep.subr.mxu0 %v191
    %474 = vmatpush1.msra.mxu0 %v190
    %475 = vmatprep.subr.mxu0 %v199
    %476 = vmatpush1.msra.mxu0 %v198
    %477 = vmatprep.subr.mxu0 %v207
    %478 = vmatpush1.msra.mxu0 %v206
    %479 = vmatprep.subr.mxu0 %v215
    %480 = vmatpush1.msra.mxu0 %v214
    %481 = vmatprep.subr.mxu0 %v223
    %482 = vmatpush1.msra.mxu0 %v222
    %483 = vmatprep.subr.mxu0 %v231
    %484 = vmatpush1.msra.mxu0 %v230
    %485 = vmatprep.subr.mxu0 %v239
    %486 = vmatpush1.msra.mxu0 %v238
    %487 = vmatprep.subr.mxu0 %v247
    %488 = vmatpush1.msra.mxu0 %v246
    %489 = vmatprep.subr.mxu0 %v255
    %490 = vmatpush1.msra.mxu0 %v254
    %491 = vmatprep.subr.mxu0 %v263
    %492 = vmatpush1.msra.mxu0 %v262
    %493 = vmatprep.subr.mxu0 %v271
    %494 = vmatpush1.msra.mxu0 %v270
    %495 = vmatprep.subr.mxu0 %v279
    %496 = vmatpush1.msra.mxu0 %v278
    %497 = vmatprep.subr.mxu0 %v287
    %498 = vmatpush1.msra.mxu0 %v286
    %499 = vmatprep.subr.mxu0 %v295
    %500 = vmatpush1.msra.mxu0 %v294
    %501 = vmatprep.subr.mxu0 %v303
    %502 = vmatpush1.msra.mxu0 %v302
    %503 = vmatprep.subr.mxu0 %v311
    %504 = vmatpush1.msra.mxu0 %v310
    %505 = vmatprep.mubr.f32.mxu0 %v55
    %506 = vmatmul.mubr.f32.gmra.mrb[0].mxu0 %v54
    %v507 = vpop.f32.mrb[0].mxu0
    %v508 = vadd.f32 %v329, %v507
    %v509 = vpop.f32.mrb[0].mxu0
    %v510 = vadd.f32 %v333, %v509
    %511 = vmatprep.mubr.f32.mxu0 %v57
    %512 = vmatmul.mubr.f32.gmra.mrb[0].mxu0 %v56
    %v513 = vpop.f32.mrb[0].mxu0
    %v514 = vadd.f32 %v329, %v513
    %v515 = vpop.f32.mrb[0].mxu0
    %v516 = vadd.f32 %v333, %v515
    %517 = vmatprep.mubr.f32.mxu0 %v59
    %518 = vmatmul.mubr.f32.gmra.mrb[0].mxu0 %v58
    %v519 = vpop.f32.mrb[0].mxu0
    %v520 = vadd.f32 %v329, %v519
    %v521 = vpop.f32.mrb[0].mxu0
    %v522 = vadd.f32 %v333, %v521
    %523 = vdwg.mxu0
    %524 = vmatprep.subr.mxu0 %v65
    %525 = vmatpush1.msra.mxu0 %v64
    %526 = vmatprep.subr.mxu0 %v73
    %527 = vmatpush1.msra.mxu0 %v72
    %528 = vmatprep.subr.mxu0 %v81
    %529 = vmatpush1.msra.mxu0 %v80
    %530 = vmatprep.subr.mxu0 %v89
    %531 = vmatpush1.msra.mxu0 %v88
    %532 = vmatprep.subr.mxu0 %v97
    %533 = vmatpush1.msra.mxu0 %v96
    %534 = vmatprep.subr.mxu0 %v105
    %535 = vmatpush1.msra.mxu0 %v104
    %536 = vmatprep.subr.mxu0 %v113
    %537 = vmatpush1.msra.mxu0 %v112
    %538 = vmatprep.subr.mxu0 %v121
    %539 = vmatpush1.msra.mxu0 %v120
    %540 = vmatprep.subr.mxu0 %v129
    %541 = vmatpush1.msra.mxu0 %v128
    %542 = vmatprep.subr.mxu0 %v137
    %543 = vmatpush1.msra.mxu0 %v136
    %544 = vmatprep.subr.mxu0 %v145
    %545 = vmatpush1.msra.mxu0 %v144
    %546 = vmatprep.subr.mxu0 %v153
    %547 = vmatpush1.msra.mxu0 %v152
    %548 = vmatprep.subr.mxu0 %v161
    %549 = vmatpush1.msra.mxu0 %v160
    %550 = vmatprep.subr.mxu0 %v169
    %551 = vmatpush1.msra.mxu0 %v168
    %552 = vmatprep.subr.mxu0 %v177
    %553 = vmatpush1.msra.mxu0 %v176
    %554 = vmatprep.subr.mxu0 %v185
    %555 = vmatpush1.msra.mxu0 %v184
    %556 = vmatprep.subr.mxu0 %v193
    %557 = vmatpush1.msra.mxu0 %v192
    %558 = vmatprep.subr.mxu0 %v201
    %559 = vmatpush1.msra.mxu0 %v200
    %560 = vmatprep.subr.mxu0 %v209
    %561 = vmatpush1.msra.mxu0 %v208
    %562 = vmatprep.subr.mxu0 %v217
    %563 = vmatpush1.msra.mxu0 %v216
    %564 = vmatprep.subr.mxu0 %v225
    %565 = vmatpush1.msra.mxu0 %v224
    %566 = vmatprep.subr.mxu0 %v233
    %567 = vmatpush1.msra.mxu0 %v232
    %568 = vmatprep.subr.mxu0 %v241
    %569 = vmatpush1.msra.mxu0 %v240
    %570 = vmatprep.subr.mxu0 %v249
    %571 = vmatpush1.msra.mxu0 %v248
    %572 = vmatprep.subr.mxu0 %v257
    %573 = vmatpush1.msra.mxu0 %v256
    %574 = vmatprep.subr.mxu0 %v265
    %575 = vmatpush1.msra.mxu0 %v264
    %576 = vmatprep.subr.mxu0 %v273
    %577 = vmatpush1.msra.mxu0 %v272
    %578 = vmatprep.subr.mxu0 %v281
    %579 = vmatpush1.msra.mxu0 %v280
    %580 = vmatprep.subr.mxu0 %v289
    %581 = vmatpush1.msra.mxu0 %v288
    %582 = vmatprep.subr.mxu0 %v297
    %583 = vmatpush1.msra.mxu0 %v296
    %584 = vmatprep.subr.mxu0 %v305
    %585 = vmatpush1.msra.mxu0 %v304
    %586 = vmatprep.subr.mxu0 %v313
    %587 = vmatpush1.msra.mxu0 %v312
    %588 = vmatprep.mubr.f32.mxu0 %v55
    %589 = vmatmul.mubr.f32.gmra.mrb[0].mxu0 %v54
    %v590 = vpop.f32.mrb[0].mxu0
    %v591 = vadd.f32 %v337, %v590
    %v592 = vpop.f32.mrb[0].mxu0
    %v593 = vadd.f32 %v341, %v592
    %594 = vmatprep.mubr.f32.mxu0 %v57
    %595 = vmatmul.mubr.f32.gmra.mrb[0].mxu0 %v56
    %v596 = vpop.f32.mrb[0].mxu0
    %v597 = vadd.f32 %v337, %v596
    %v598 = vpop.f32.mrb[0].mxu0
    %v599 = vadd.f32 %v341, %v598
    %600 = vmatprep.mubr.f32.mxu0 %v59
    %601 = vmatmul.mubr.f32.gmra.mrb[0].mxu0 %v58
    %v602 = vpop.f32.mrb[0].mxu0
    %v603 = vadd.f32 %v337, %v602
    %v604 = vpop.f32.mrb[0].mxu0
    %v605 = vadd.f32 %v341, %v604
    %606 = vdwg.mxu0
    %607 = vmatprep.subr.mxu0 %v67
    %608 = vmatpush1.msra.mxu0 %v66
    %609 = vmatprep.subr.mxu0 %v75
    %610 = vmatpush1.msra.mxu0 %v74
    %611 = vmatprep.subr.mxu0 %v83
    %612 = vmatpush1.msra.mxu0 %v82
    %613 = vmatprep.subr.mxu0 %v91
    %614 = vmatpush1.msra.mxu0 %v90
    %615 = vmatprep.subr.mxu0 %v99
    %616 = vmatpush1.msra.mxu0 %v98
    %617 = vmatprep.subr.mxu0 %v107
    %618 = vmatpush1.msra.mxu0 %v106
    %619 = vmatprep.subr.mxu0 %v115
    %620 = vmatpush1.msra.mxu0 %v114
    %621 = vmatprep.subr.mxu0 %v123
    %622 = vmatpush1.msra.mxu0 %v122
    %623 = vmatprep.subr.mxu0 %v131
    %624 = vmatpush1.msra.mxu0 %v130
    %625 = vmatprep.subr.mxu0 %v139
    %626 = vmatpush1.msra.mxu0 %v138
    %627 = vmatprep.subr.mxu0 %v147
    %628 = vmatpush1.msra.mxu0 %v146
    %629 = vmatprep.subr.mxu0 %v155
    %630 = vmatpush1.msra.mxu0 %v154
    %631 = vmatprep.subr.mxu0 %v163
    %632 = vmatpush1.msra.mxu0 %v162
    %633 = vmatprep.subr.mxu0 %v171
    %634 = vmatpush1.msra.mxu0 %v170
    %635 = vmatprep.subr.mxu0 %v179
    %636 = vmatpush1.msra.mxu0 %v178
    %637 = vmatprep.subr.mxu0 %v187
    %638 = vmatpush1.msra.mxu0 %v186
    %639 = vmatprep.subr.mxu0 %v195
    %640 = vmatpush1.msra.mxu0 %v194
    %641 = vmatprep.subr.mxu0 %v203
    %642 = vmatpush1.msra.mxu0 %v202
    %643 = vmatprep.subr.mxu0 %v211
    %644 = vmatpush1.msra.mxu0 %v210
    %645 = vmatprep.subr.mxu0 %v219
    %646 = vmatpush1.msra.mxu0 %v218
    %647 = vmatprep.subr.mxu0 %v227
    %648 = vmatpush1.msra.mxu0 %v226
    %649 = vmatprep.subr.mxu0 %v235
    %650 = vmatpush1.msra.mxu0 %v234
    %651 = vmatprep.subr.mxu0 %v243
    %652 = vmatpush1.msra.mxu0 %v242
    %653 = vmatprep.subr.mxu0 %v251
    %654 = vmatpush1.msra.mxu0 %v250
    %655 = vmatprep.subr.mxu0 %v259
    %656 = vmatpush1.msra.mxu0 %v258
    %657 = vmatprep.subr.mxu0 %v267
    %658 = vmatpush1.msra.mxu0 %v266
    %659 = vmatprep.subr.mxu0 %v275
    %660 = vmatpush1.msra.mxu0 %v274
    %661 = vmatprep.subr.mxu0 %v283
    %662 = vmatpush1.msra.mxu0 %v282
    %663 = vmatprep.subr.mxu0 %v291
    %664 = vmatpush1.msra.mxu0 %v290
    %665 = vmatprep.subr.mxu0 %v299
    %666 = vmatpush1.msra.mxu0 %v298
    %667 = vmatprep.subr.mxu0 %v307
    %668 = vmatpush1.msra.mxu0 %v306
    %669 = vmatprep.subr.mxu0 %v315
    %670 = vmatpush1.msra.mxu0 %v314
    %671 = vmatprep.mubr.f32.mxu0 %v55
    %672 = vmatmul.mubr.f32.gmra.mrb[0].mxu0 %v54
    %v673 = vpop.f32.mrb[0].mxu0
    %v674 = vadd.f32 %v345, %v673
    %v675 = vpop.f32.mrb[0].mxu0
    %v676 = vadd.f32 %v349, %v675
    %677 = vmatprep.mubr.f32.mxu0 %v57
    %678 = vmatmul.mubr.f32.gmra.mrb[0].mxu0 %v56
    %v679 = vpop.f32.mrb[0].mxu0
    %v680 = vadd.f32 %v345, %v679
    %v681 = vpop.f32.mrb[0].mxu0
    %v682 = vadd.f32 %v349, %v681
    %683 = vmatprep.mubr.f32.mxu0 %v59
    %684 = vmatmul.mubr.f32.gmra.mrb[0].mxu0 %v58
    %v685 = vpop.f32.mrb[0].mxu0
    %v686 = vadd.f32 %v345, %v685
    %v687 = vpop.f32.mrb[0].mxu0
    %v688 = vadd.f32 %v349, %v687
    %689 = vdwg.mxu0
    %690 = vst [vmem:[#allocation8] sm:$0xff] %v425
    %691 = vst [vmem:[#allocation8 + $0x8] sm:$0xff] %v427
    %692 = vst [vmem:[#allocation8 + $0x10] sm:$0xff] %v508
    %693 = vst [vmem:[#allocation8 + $0x18] sm:$0xff] %v510
    %694 = vst [vmem:[#allocation8 + $0x20] sm:$0xff] %v591
    %695 = vst [vmem:[#allocation8 + $0x28] sm:$0xff] %v593
    %696 = vst [vmem:[#allocation8 + $0x30] sm:$0xff] %v674
    %697 = vst [vmem:[#allocation8 + $0x38] sm:$0xff] %v676
    %698 = vst [vmem:[#allocation8 + $0x40] sm:$0xff] %v431
    %699 = vst [vmem:[#allocation8 + $0x48] sm:$0xff] %v433
    %700 = vst [vmem:[#allocation8 + $0x50] sm:$0xff] %v514
    %701 = vst [vmem:[#allocation8 + $0x58] sm:$0xff] %v516
    %702 = vst [vmem:[#allocation8 + $0x60] sm:$0xff] %v597
    %703 = vst [vmem:[#allocation8 + $0x68] sm:$0xff] %v599
    %704 = vst [vmem:[#allocation8 + $0x70] sm:$0xff] %v680
    %705 = vst [vmem:[#allocation8 + $0x78] sm:$0xff] %v682
    %706 = vst [vmem:[#allocation8 + $0x80] sm:$0xff] %v437
    %707 = vst [vmem:[#allocation8 + $0x88] sm:$0xff] %v439
    %708 = vst [vmem:[#allocation8 + $0x90] sm:$0xff] %v520
    %709 = vst [vmem:[#allocation8 + $0x98] sm:$0xff] %v522
    %710 = vst [vmem:[#allocation8 + $0xa0] sm:$0xff] %v603
    %711 = vst [vmem:[#allocation8 + $0xa8] sm:$0xff] %v605
    %712 = vst [vmem:[#allocation8 + $0xb0] sm:$0xff] %v686
    %713 = vst [vmem:[#allocation8 + $0xb8] sm:$0xff] %v688
    // Predicated region
    $region26: #{tpu_custom_call.1} parent=1 // pred_check
      _
    $region27: #{tpu_custom_call.1} parent=1 // pred_check_branch
      %715 = sbr.rel (0) target = $region29
    $region28: #{tpu_custom_call.1} parent=1 // pred_region
      %s717 = ssub.s32 3072, 3072
      %718 = vsyncadd [#allocation4], %s717
      %s719 = sshll.u32 [#allocation8], 4
      %s720 = int_to_ptr.vmem [resolvable:$true] %s719
      %725 = dma.vmem_to_hbm [thread:$0]  %s720, 3072, %s3, [#allocation4], 1024, 1024, 64
    $region29: #{tpu_custom_call.1} parent=1 // pred_fallthru
      _
    // Predicated region
    $region30: #{tpu_custom_call.1} parent=1 // pred_check
      _
    $region31: #{tpu_custom_call.1} parent=1 // pred_check_branch
      %727 = sbr.rel (0) target = $region33
    $region32: #{tpu_custom_call.1} parent=1 // pred_region
      %728 = dma.done [#allocation4], 3072
    $region33: #{tpu_custom_call.1} parent=1 // pred_fallthru
      _
    %729 = vsyncpa [#allocation3], 1
    %730 = vsyncpa [#allocation6], 1
    %731 = vsyncpa [#allocation4], 1

</llo_original>
